<compile_context>
chip_gen: v5e
topology: v5e:2x2
jax: 0.10.0
libtpu: 0.0.40
codegen_flags: <defaults>
</compile_context>

<pallas_src>
import math
from functools import partial

import jax
import jax.numpy as jnp
import numpy as np
from jax.experimental import pallas as pl
from jax.experimental.pallas import tpu as pltpu

# Loss hyper-parameters (match the PyTorch module defaults).
LAMBDA_COORD = 5.0
LAMBDA_GROUP = 0.5
FOCAL_ALPHA = 0.25
FOCAL_GAMMA = 2.0
WING_W = 10.0
WING_EPS = 2.0

LANES = 128          # TPU lane width
MAX_TILE_ROWS = 512  # 512 x 128 x 4B x 6 planes ~ 1.5 MiB per block (x2 buffers)
PAD_LOGIT = -1.0e4   # focal(gp=0, pp=-1e4) underflows to exactly 0.0 in f32


def _loss_sums_kernel(packed_ref, out_ref, *,
                      focal_alpha, focal_gamma, wing_w, wing_eps):
    """Accumulates the three reductions needed by KeypointLoss.

    packed_ref: (6, TILE_ROWS, 128) VMEM block with channels
        0: pred presence logits   1: gt presence (0/1)
        2: pred x   3: pred y     4: gt x   5: gt y
    out_ref (SMEM, shape (3,)), accumulated across the grid:
        [0] sum of focal loss over presence logits
        [1] sum of (wing_loss * presence_mask) over coordinates
        [2] sum of presence_mask (== 2 * sum(gt_presence))
    """
    @pl.when(pl.program_id(0) == 0)
    def _():
        out_ref[0] = jnp.float32(0.0)
        out_ref[1] = jnp.float32(0.0)
        out_ref[2] = jnp.float32(0.0)

    pp = packed_ref[0]    # (R, 128) presence logits
    gp = packed_ref[1]    # (R, 128) gt presence
    pcx = packed_ref[2]
    pcy = packed_ref[3]
    gcx = packed_ref[4]
    gcy = packed_ref[5]

    # ---- Focal loss on presence logits: one exp per element, shared between
    #      the stable BCE-with-logits and sigmoid. ----
    e = jnp.exp(-jnp.abs(pp))                            # single EUP exp
    bce = jnp.maximum(pp, 0.0) - pp * gp + jnp.log1p(e)  # == F.bce_with_logits
    inv_1pe = 1.0 / (1.0 + e)
    prob = jnp.where(pp >= 0.0, inv_1pe, e * inv_1pe)    # == sigmoid(pp)
    p_t = prob * gp + (1.0 - prob) * (1.0 - gp)
    one_m_pt = 1.0 - p_t
    if focal_gamma == 2.0:
        focal_w = one_m_pt * one_m_pt
    else:
        # guard pow(0, non-integer gamma) -> NaN
        focal_w = jnp.maximum(one_m_pt, 1e-12) ** focal_gamma
    alpha_t = focal_alpha * gp + (1.0 - focal_alpha) * (1.0 - gp)
    focal_sum = jnp.sum(alpha_t * focal_w * bce)

    # ---- Wing loss on coords: reduce the x/y channel BEFORE masking by gp,
    #      so no (2, ...) broadcast mask is ever materialized. ----
    c = wing_w * (1.0 - math.log(1.0 + wing_w / wing_eps))

    def wing(abs_diff):
        return jnp.where(abs_diff < wing_w,
                         wing_w * jnp.log1p(abs_diff / wing_eps),
                         abs_diff - c)

    wing_xy = wing(jnp.abs(pcx - gcx)) + wing(jnp.abs(pcy - gcy))
    masked_sum = jnp.sum(wing_xy * gp)
    gp_sum = jnp.sum(gp)

    out_ref[0] += focal_sum
    out_ref[1] += masked_sum
    out_ref[2] += 2.0 * gp_sum


def keypoint_loss(pred_keypoints, targets):
    """JAX/Pallas equivalent of KeypointLoss.forward(outputs=tensor, targets).

    pred_keypoints, targets: float32 [batch, num_keypoints, 3]
    Returns dict with 'total', 'presence', 'coord', 'group' (scalars).
    """
    B, K, _ = pred_keypoints.shape
    n = B * K

    pp = pred_keypoints[:, :, 0].reshape(-1).astype(jnp.float32)
    gp = targets[:, :, 0].reshape(-1).astype(jnp.float32)
    pcx = pred_keypoints[:, :, 1].reshape(-1).astype(jnp.float32)
    pcy = pred_keypoints[:, :, 2].reshape(-1).astype(jnp.float32)
    gcx = targets[:, :, 1].reshape(-1).astype(jnp.float32)
    gcy = targets[:, :, 2].reshape(-1).astype(jnp.float32)

    # Lane-dense padded layout: rows x 128 lanes, rows padded to a multiple of
    # the tile height so the grid divides evenly.
    rows_needed = -(-n // LANES)
    rows_8 = -(-rows_needed // 8) * 8
    tile_rows = min(MAX_TILE_ROWS, rows_8)
    grid_steps = -(-rows_needed // tile_rows)
    rows_padded = grid_steps * tile_rows
    pad = rows_padded * LANES - n

    def padded(x, val):
        return jnp.pad(x, (0, pad), constant_values=val)

    # One contiguous slab -> a single input DMA per grid step.
    packed = jnp.stack(
        [padded(pp, PAD_LOGIT), padded(gp, 0.0),
         padded(pcx, 0.0), padded(pcy, 0.0),
         padded(gcx, 0.0), padded(gcy, 0.0)],
        axis=0).reshape(6, rows_padded, LANES)

    kernel = partial(_loss_sums_kernel,
                     focal_alpha=FOCAL_ALPHA, focal_gamma=FOCAL_GAMMA,
                     wing_w=WING_W, wing_eps=WING_EPS)

    sums = pl.pallas_call(
        kernel,
        out_shape=jax.ShapeDtypeStruct((3,), jnp.float32),
        grid=(grid_steps,),
        in_specs=[pl.BlockSpec((6, tile_rows, LANES), lambda i: (0, i, 0))],
        out_specs=pl.BlockSpec(memory_space=pltpu.MemorySpace.SMEM),
        compiler_params=pltpu.CompilerParams(
            # Grid axis accumulates into a resident SMEM output block -> must
            # be a reduction ("arbitrary"), not "parallel".
            dimension_semantics=("arbitrary",)),
    )(packed)

    focal_sum, masked_sum, mask_sum = sums[0], sums[1], sums[2]

    presence_loss = focal_sum / jnp.float32(n)                      # .mean()
    safe_den = jnp.where(mask_sum > 0, mask_sum, jnp.float32(1.0))
    coord_loss = jnp.where(mask_sum > 0, masked_sum / safe_den, jnp.float32(0.0))
    # TODO(synk): group-loss branch needs 'group_probs' + module-external
    # globals (all_keypoint_classes / group_1..3); tensor-input forward always
    # yields group_loss = 0.
    group_loss = jnp.float32(0.0)
    total = presence_loss + LAMBDA_COORD * coord_loss + LAMBDA_GROUP * group_loss
    return {'total': total, 'presence': presence_loss,
            'coord': coord_loss, 'group': group_loss}


def _reference_loss(pred_keypoints, targets):
    """Pure-JAX reference replicating the PyTorch forward exactly."""
    pp = pred_keypoints[:, :, 0]
    pc = pred_keypoints[:, :, 1:]
    gp = targets[:, :, 0]
    gc = targets[:, :, 1:]

    prob = jax.nn.sigmoid(pp)
    bce = jnp.maximum(pp, 0.0) - pp * gp + jnp.log1p(jnp.exp(-jnp.abs(pp)))
    p_t = prob * gp + (1 - prob) * (1 - gp)
    focal = (FOCAL_ALPHA * gp + (1 - FOCAL_ALPHA) * (1 - gp)) * (1 - p_t) ** FOCAL_GAMMA * bce
    presence_loss = focal.mean()

    c = WING_W * (1.0 - np.log(1.0 + WING_W / WING_EPS))
    ad = jnp.abs(pc - gc)
    wing = jnp.where(ad < WING_W, WING_W * jnp.log(1.0 + ad / WING_EPS), ad - c)
    mask = jnp.broadcast_to(gp[:, :, None], pc.shape)
    num_present = mask.sum()
    coord_loss = jnp.where(num_present > 0,
                           (wing * mask).sum() / jnp.where(num_present > 0, num_present, 1.0),
                           0.0)
    total = presence_loss + LAMBDA_COORD * coord_loss
    return {'total': total, 'presence': presence_loss, 'coord': coord_loss,
            'group': jnp.float32(0.0)}


if __name__ == "__main__":
    key = jax.random.PRNGKey(0)
    k1, k2, k3 = jax.random.split(key, 3)

    B, K = 2, 8  # batch=2, num_keypoints=8, last dim = 3 (presence, x, y)
    pred = jax.random.normal(k1, (B, K, 3), dtype=jnp.float32)
    gt_presence = jax.random.bernoulli(k2, 0.6, (B, K)).astype(jnp.float32)
    gt_coords = jax.random.uniform(k3, (B, K, 2), dtype=jnp.float32)
    targets = jnp.concatenate([gt_presence[:, :, None], gt_coords], axis=-1)

    out = keypoint_loss(pred, targets)
    jax.block_until_ready(out)

    ref = _reference_loss(pred, targets)
    for name in ('total', 'presence', 'coord', 'group'):
        np.testing.assert_allclose(np.asarray(out[name]), np.asarray(ref[name]),
                                   rtol=1e-5, atol=1e-5)

    print("KERNEL_OK")
</pallas_src>

<mosaic_0001>
module attributes {stable_mosaic.version = 11 : i64} {
  func.func @_loss_sums_kernel(%arg0: i32, %arg1: memref<6x8x128xf32, #tpu.memory_space<vmem>>, %arg2: memref<3xf32, #tpu.memory_space<smem>>) attributes {dimension_semantics = [#tpu.dimension_semantics<arbitrary>], iteration_bounds = array<i64: 1>, scalar_prefetch = 0 : i64, scratch_operands = 0 : i64, tpu.core_type = #tpu.core_type<tc>, window_params = [{transform_indices = @transform_0, window_bounds = array<i64: 6, 8, 128>}, {transform_indices = @transform_1, window_bounds = array<i64: 3>}]} {
    %c0_i32 = arith.constant 0 : i32
    %0 = arith.cmpi eq, %arg0, %c0_i32 : i32
    %1 = arith.extui %0 : i1 to i32
    %c0_i32_0 = arith.constant 0 : i32
    %2 = arith.cmpi ne, %1, %c0_i32_0 : i32
    scf.if %2 {
      %cst_41 = arith.constant 0.000000e+00 : f32
      %c0_42 = arith.constant 0 : index
      %100 = memref.load %arg2[%c0_42] : memref<3xf32, #tpu.memory_space<smem>>
      memref.store %cst_41, %arg2[%c0_42] : memref<3xf32, #tpu.memory_space<smem>>
      %cst_43 = arith.constant 0.000000e+00 : f32
      %c1_44 = arith.constant 1 : index
      %101 = memref.load %arg2[%c1_44] : memref<3xf32, #tpu.memory_space<smem>>
      memref.store %cst_43, %arg2[%c1_44] : memref<3xf32, #tpu.memory_space<smem>>
      %cst_45 = arith.constant 0.000000e+00 : f32
      %c2_46 = arith.constant 2 : index
      %102 = memref.load %arg2[%c2_46] : memref<3xf32, #tpu.memory_space<smem>>
      memref.store %cst_45, %arg2[%c2_46] : memref<3xf32, #tpu.memory_space<smem>>
    } else {
    }
    %c0 = arith.constant 0 : index
    %c0_1 = arith.constant 0 : index
    %c0_2 = arith.constant 0 : index
    %3 = vector.load %arg1[%c0, %c0_1, %c0_2] : memref<6x8x128xf32, #tpu.memory_space<vmem>>, vector<1x8x128xf32>
    %4 = vector.shape_cast %3 : vector<1x8x128xf32> to vector<8x128xf32>
    %c1 = arith.constant 1 : index
    %c0_3 = arith.constant 0 : index
    %c0_4 = arith.constant 0 : index
    %5 = vector.load %arg1[%c1, %c0_3, %c0_4] : memref<6x8x128xf32, #tpu.memory_space<vmem>>, vector<1x8x128xf32>
    %6 = vector.shape_cast %5 : vector<1x8x128xf32> to vector<8x128xf32>
    %c2 = arith.constant 2 : index
    %c0_5 = arith.constant 0 : index
    %c0_6 = arith.constant 0 : index
    %7 = vector.load %arg1[%c2, %c0_5, %c0_6] : memref<6x8x128xf32, #tpu.memory_space<vmem>>, vector<1x8x128xf32>
    %8 = vector.shape_cast %7 : vector<1x8x128xf32> to vector<8x128xf32>
    %c3 = arith.constant 3 : index
    %c0_7 = arith.constant 0 : index
    %c0_8 = arith.constant 0 : index
    %9 = vector.load %arg1[%c3, %c0_7, %c0_8] : memref<6x8x128xf32, #tpu.memory_space<vmem>>, vector<1x8x128xf32>
    %10 = vector.shape_cast %9 : vector<1x8x128xf32> to vector<8x128xf32>
    %c4 = arith.constant 4 : index
    %c0_9 = arith.constant 0 : index
    %c0_10 = arith.constant 0 : index
    %11 = vector.load %arg1[%c4, %c0_9, %c0_10] : memref<6x8x128xf32, #tpu.memory_space<vmem>>, vector<1x8x128xf32>
    %12 = vector.shape_cast %11 : vector<1x8x128xf32> to vector<8x128xf32>
    %c5 = arith.constant 5 : index
    %c0_11 = arith.constant 0 : index
    %c0_12 = arith.constant 0 : index
    %13 = vector.load %arg1[%c5, %c0_11, %c0_12] : memref<6x8x128xf32, #tpu.memory_space<vmem>>, vector<1x8x128xf32>
    %14 = vector.shape_cast %13 : vector<1x8x128xf32> to vector<8x128xf32>
    %15 = math.absf %4 : vector<8x128xf32>
    %cst = arith.constant 0.000000e+00 : f32
    %16 = vector.broadcast %cst : f32 to vector<8x128xf32>
    %17 = arith.subf %16, %15 : vector<8x128xf32>
    %18 = math.exp %17 : vector<8x128xf32>
    %cst_13 = arith.constant 0.000000e+00 : f32
    %19 = vector.broadcast %cst_13 : f32 to vector<8x128xf32>
    %20 = arith.maximumf %4, %19 : vector<8x128xf32>
    %21 = arith.mulf %4, %6 : vector<8x128xf32>
    %22 = arith.subf %20, %21 : vector<8x128xf32>
    %23 = math.log1p %18 : vector<8x128xf32>
    %24 = arith.addf %22, %23 : vector<8x128xf32>
    %cst_14 = arith.constant 1.000000e+00 : f32
    %25 = vector.broadcast %cst_14 : f32 to vector<8x128xf32>
    %26 = arith.addf %25, %18 : vector<8x128xf32>
    %cst_15 = arith.constant 1.000000e+00 : f32
    %27 = vector.broadcast %cst_15 : f32 to vector<8x128xf32>
    %28 = arith.divf %27, %26 : vector<8x128xf32>
    %cst_16 = arith.constant 0.000000e+00 : f32
    %29 = vector.broadcast %cst_16 : f32 to vector<8x128xf32>
    %30 = arith.cmpf oge, %4, %29 : vector<8x128xf32>
    %31 = arith.mulf %18, %28 : vector<8x128xf32>
    %32 = arith.select %30, %28, %31 : vector<8x128xi1>, vector<8x128xf32>
    %33 = arith.mulf %32, %6 : vector<8x128xf32>
    %cst_17 = arith.constant 1.000000e+00 : f32
    %34 = vector.broadcast %cst_17 : f32 to vector<8x128xf32>
    %35 = arith.subf %34, %32 : vector<8x128xf32>
    %cst_18 = arith.constant 1.000000e+00 : f32
    %36 = vector.broadcast %cst_18 : f32 to vector<8x128xf32>
    %37 = arith.subf %36, %6 : vector<8x128xf32>
    %38 = arith.mulf %35, %37 : vector<8x128xf32>
    %39 = arith.addf %33, %38 : vector<8x128xf32>
    %cst_19 = arith.constant 1.000000e+00 : f32
    %40 = vector.broadcast %cst_19 : f32 to vector<8x128xf32>
    %41 = arith.subf %40, %39 : vector<8x128xf32>
    %42 = arith.mulf %41, %41 : vector<8x128xf32>
    %cst_20 = arith.constant 2.500000e-01 : f32
    %43 = vector.broadcast %cst_20 : f32 to vector<8x128xf32>
    %44 = arith.mulf %43, %6 : vector<8x128xf32>
    %cst_21 = arith.constant 1.000000e+00 : f32
    %45 = vector.broadcast %cst_21 : f32 to vector<8x128xf32>
    %46 = arith.subf %45, %6 : vector<8x128xf32>
    %cst_22 = arith.constant 7.500000e-01 : f32
    %47 = vector.broadcast %cst_22 : f32 to vector<8x128xf32>
    %48 = arith.mulf %47, %46 : vector<8x128xf32>
    %49 = arith.addf %44, %48 : vector<8x128xf32>
    %50 = arith.mulf %49, %42 : vector<8x128xf32>
    %51 = arith.mulf %50, %24 : vector<8x128xf32>
    %52 = vector.shape_cast %51 : vector<8x128xf32> to vector<1x8x128xf32>
    %cst_23 = arith.constant dense<0.000000e+00> : vector<1xf32>
    %53 = vector.multi_reduction <add>, %52, %cst_23 [1, 2] : vector<1x8x128xf32> to vector<1xf32>
    %54 = vector.shape_cast %53 : vector<1xf32> to vector<1x1x1xf32>
    %55 = vector.extract %54[0, 0, 0] : f32 from vector<1x1x1xf32>
    %56 = arith.subf %8, %12 : vector<8x128xf32>
    %57 = math.absf %56 : vector<8x128xf32>
    %cst_24 = arith.constant 1.000000e+01 : f32
    %58 = vector.broadcast %cst_24 : f32 to vector<8x128xf32>
    %59 = arith.cmpf olt, %57, %58 : vector<8x128xf32>
    %cst_25 = arith.constant 2.000000e+00 : f32
    %60 = vector.broadcast %cst_25 : f32 to vector<8x128xf32>
    %61 = arith.divf %57, %60 : vector<8x128xf32>
    %62 = math.log1p %61 : vector<8x128xf32>
    %cst_26 = arith.constant 1.000000e+01 : f32
    %63 = vector.broadcast %cst_26 : f32 to vector<8x128xf32>
    %64 = arith.mulf %63, %62 : vector<8x128xf32>
    %cst_27 = arith.constant -7.9175949 : f32
    %65 = vector.broadcast %cst_27 : f32 to vector<8x128xf32>
    %66 = arith.subf %57, %65 : vector<8x128xf32>
    %67 = arith.select %59, %64, %66 : vector<8x128xi1>, vector<8x128xf32>
    %68 = arith.subf %10, %14 : vector<8x128xf32>
    %69 = math.absf %68 : vector<8x128xf32>
    %cst_28 = arith.constant 1.000000e+01 : f32
    %70 = vector.broadcast %cst_28 : f32 to vector<8x128xf32>
    %71 = arith.cmpf olt, %69, %70 : vector<8x128xf32>
    %cst_29 = arith.constant 2.000000e+00 : f32
    %72 = vector.broadcast %cst_29 : f32 to vector<8x128xf32>
    %73 = arith.divf %69, %72 : vector<8x128xf32>
    %74 = math.log1p %73 : vector<8x128xf32>
    %cst_30 = arith.constant 1.000000e+01 : f32
    %75 = vector.broadcast %cst_30 : f32 to vector<8x128xf32>
    %76 = arith.mulf %75, %74 : vector<8x128xf32>
    %cst_31 = arith.constant -7.9175949 : f32
    %77 = vector.broadcast %cst_31 : f32 to vector<8x128xf32>
    %78 = arith.subf %69, %77 : vector<8x128xf32>
    %79 = arith.select %71, %76, %78 : vector<8x128xi1>, vector<8x128xf32>
    %80 = arith.addf %67, %79 : vector<8x128xf32>
    %81 = arith.mulf %80, %6 : vector<8x128xf32>
    %82 = vector.shape_cast %81 : vector<8x128xf32> to vector<1x8x128xf32>
    %cst_32 = arith.constant dense<0.000000e+00> : vector<1xf32>
    %83 = vector.multi_reduction <add>, %82, %cst_32 [1, 2] : vector<1x8x128xf32> to vector<1xf32>
    %84 = vector.shape_cast %83 : vector<1xf32> to vector<1x1x1xf32>
    %85 = vector.extract %84[0, 0, 0] : f32 from vector<1x1x1xf32>
    %86 = vector.shape_cast %6 : vector<8x128xf32> to vector<1x8x128xf32>
    %cst_33 = arith.constant dense<0.000000e+00> : vector<1xf32>
    %87 = vector.multi_reduction <add>, %86, %cst_33 [1, 2] : vector<1x8x128xf32> to vector<1xf32>
    %88 = vector.shape_cast %87 : vector<1xf32> to vector<1x1x1xf32>
    %89 = vector.extract %88[0, 0, 0] : f32 from vector<1x1x1xf32>
    %c0_34 = arith.constant 0 : index
    %90 = memref.load %arg2[%c0_34] : memref<3xf32, #tpu.memory_space<smem>>
    %91 = arith.addf %90, %55 : f32
    %c0_35 = arith.constant 0 : index
    %92 = memref.load %arg2[%c0_35] : memref<3xf32, #tpu.memory_space<smem>>
    memref.store %91, %arg2[%c0_35] : memref<3xf32, #tpu.memory_space<smem>>
    %c1_36 = arith.constant 1 : index
    %93 = memref.load %arg2[%c1_36] : memref<3xf32, #tpu.memory_space<smem>>
    %94 = arith.addf %93, %85 : f32
    %c1_37 = arith.constant 1 : index
    %95 = memref.load %arg2[%c1_37] : memref<3xf32, #tpu.memory_space<smem>>
    memref.store %94, %arg2[%c1_37] : memref<3xf32, #tpu.memory_space<smem>>
    %c2_38 = arith.constant 2 : index
    %96 = memref.load %arg2[%c2_38] : memref<3xf32, #tpu.memory_space<smem>>
    %cst_39 = arith.constant 2.000000e+00 : f32
    %97 = arith.mulf %cst_39, %89 : f32
    %98 = arith.addf %96, %97 : f32
    %c2_40 = arith.constant 2 : index
    %99 = memref.load %arg2[%c2_40] : memref<3xf32, #tpu.memory_space<smem>>
    memref.store %98, %arg2[%c2_40] : memref<3xf32, #tpu.memory_space<smem>>
    return
  }
  func.func @transform_0(%arg0: i32) -> (i32, i32, i32) {
    %c0_i32 = arith.constant 0 : i32
    %c0_i32_0 = arith.constant 0 : i32
    %c0_i32_1 = arith.constant 0 : i32
    return %c0_i32, %arg0, %c0_i32_0 : i32, i32, i32
  }
  func.func @transform_1(%arg0: i32) -> i32 {
    %c0_i32 = arith.constant 0 : i32
    %c0_i32_0 = arith.constant 0 : i32
    return %c0_i32 : i32
  }
}

</mosaic_0001>

<llo_original>
// kernel: tpu_custom_call.1
$region0: #{tpu_custom_call.1}
  #allocation0 [shape = 'u32[]', space=smem, size = 0x4, offset = 0x4, fixed_abs, tag = 'smem constant byte address 0x4 - core index']
  #allocation1 [shape = 'u32[72,128]{1,0:T(1,128)}', space=vmem, size = 0x9000, scoped, tag = 'internal scratch']
  %s0 = inlined_call_operand.hbm [shape: f32[6,8,128], index: 0, kind: input, shape index: {}]
  %s1 = inlined_call_operand.hbm [shape: f32[3], index: 1, kind: output, shape index: {}]
  %s2 = sld [smem:[#allocation0]]
  $region22: #{tpu_custom_call.1} parent=0
    _
  %s4 = ssub.s32 1, %s2
  %s5 = scalar_select 0, %s4, %s2
  $region1: #{tpu_custom_call.1} parent=0
    #allocation2 [shape = 'u8[24576]{0}', space=vmem, size = 0x6000, scoped, tag = 'input window, operand 0, single buffered']
    #allocation3 [shape = 's32[1]{0}', space=sflag, size = 0x4, scoped, tag = 'scoped memory for tpu_custom_call.1']
    #allocation4 [shape = 's32[1]{0}', space=sflag, size = 0x4, scoped, tag = 'scoped memory for tpu_custom_call.1']
    #allocation5 [shape = 'u8[512]{0}', space=smem, size = 0x200, scoped, tag = 'output window, operand 0, single buffered']
    %6 = vsyncpa [#allocation3], 0
    %7 = vsyncpa [#allocation4], 0
    // Predicated region
    $region2: #{tpu_custom_call.1} parent=1 // pred_check
      _
    $region3: #{tpu_custom_call.1} parent=1 // pred_check_branch
      %9 = sbr.rel (0) target = $region5
    $region4: #{tpu_custom_call.1} parent=1 // pred_region
      %11 = vsyncadd [#allocation3], 0
      %s12 = sshll.u32 %s0, 4
      %s13 = int_to_ptr.hbm [resolvable:$true] %s12
      %s14 = sshll.u32 [#allocation2], 4
      %s15 = int_to_ptr.vmem [resolvable:$true] %s14
      %20 = dma.hbm_to_vmem [thread:$0]  %s13, 768, %s15, [#allocation3], 128, 128, 8
    $region5: #{tpu_custom_call.1} parent=1 // pred_fallthru
      _
    // Predicated region
    $region6: #{tpu_custom_call.1} parent=1 // pred_check
      _
    $region7: #{tpu_custom_call.1} parent=1 // pred_check_branch
      %22 = sbr.rel (0) target = $region9
    $region8: #{tpu_custom_call.1} parent=1 // pred_region
      %24 = dma.done [#allocation3], 768
    $region9: #{tpu_custom_call.1} parent=1 // pred_fallthru
      _
    %p25 = scmp.eq.s32.totalorder 0, 0
    // Predicated region
    $region10: #{tpu_custom_call.1} parent=1 // pred_check
      %p26 = pneg %p25
    $region11: #{tpu_custom_call.1} parent=1 // pred_check_branch
      %28 = sbr.rel (%p26) target = $region13
    $region12: #{tpu_custom_call.1} parent=1 // pred_region
      %s29 = scalar_lea.smem [#allocation5], 0
      %30 = sst [smem:[%s29]] 0.0
      %s31 = scalar_lea.smem [#allocation5], 1
      %32 = sst [smem:[%s31]] 0.0
      %s33 = scalar_lea.smem [#allocation5], 2
      %34 = sst [smem:[%s33]] 0.0
    $region13: #{tpu_custom_call.1} parent=1 // pred_fallthru
      _
    %v35 = vld [vmem:[#allocation2] sm:$0xff]
    %s36 = scalar_lea.vmem [#allocation2], 8
    %v37 = vld [vmem:[%s36] sm:$0xff]
    %s38 = scalar_lea.vmem [#allocation2], 16
    %v39 = vld [vmem:[%s38] sm:$0xff]
    %s40 = scalar_lea.vmem [#allocation2], 24
    %v41 = vld [vmem:[%s40] sm:$0xff]
    %s42 = scalar_lea.vmem [#allocation2], 32
    %v43 = vld [vmem:[%s42] sm:$0xff]
    %s44 = scalar_lea.vmem [#allocation2], 40
    %v45 = vld [vmem:[%s44] sm:$0xff]
    %v46 = vand.u32 2147483647, %v35
    %v47 = vsub.f32 0.0, %v46
    %v48 = vmul.f32 %v47, 1.442695
    %v49 = vpow.pop %v48
    %v50 = vmax.f32 %v35, 0.0
    %v51 = vmul.f32 %v35, %v37
    %v52 = vsub.f32 %v50, %v51
    %v53 = vadd.f32 %v49, 1.0
    %v54 = vlog2.pop %v53
    %v55 = vmul.f32 %v54, 0.6931472
    %v56 = vmul.f32 -0.5, %v49
    %v57 = vadd.f32 %v56, 1.0
    %v58 = vmul.f32 %v57, %v49
    %v59 = vand.u32 2147483647, %v49
    %vm60 = vcmp.lt.f32.partialorder %v59, 0.0004427343
    %v61 = vsel %vm60, %v58, %v55
    %v62 = vadd.f32 %v52, %v61
    %v63 = vadd.f32 %v49, 1.0
    %v64 = vrcp.pop %v63
    %v65 = vmul.f32 %v63, %v64
    %v66 = vsub.f32 1.0, %v65
    %v67 = vmul.f32 %v64, %v66
    %v68 = vadd.f32 %v64, %v67
    %vm69 = vweird.f32 %v63
    %vm70 = vweird.f32 %v64
    %vm71 = vmor %vm69, %vm70
    %v72 = vsel %vm71, %v64, %v68
    %v73 = vand.u32 2147483647, %v63
    %vm74 = vcmp.eq.f32.partialorder %v73, 8.507059e+37
    %v75 = vand.u32 %v63, 2147483648
    %v76 = vor.u32 1.1754944e-38, %v75
    %v77 = vsel %vm74, %v76, %v72
    %v78 = vmul.f32 1.0, %v77
    %vm79 = vcmp.ge.f32.partialorder %v35, 0.0
    %v80 = vmul.f32 %v49, %v78
    %v81 = vsel %vm79, %v78, %v80
    %v82 = vmul.f32 %v81, %v37
    %v83 = vsub.f32 1.0, %v81
    %v84 = vsub.f32 1.0, %v37
    %v85 = vmul.f32 %v83, %v84
    %v86 = vadd.f32 %v82, %v85
    %v87 = vsub.f32 1.0, %v86
    %v88 = vmul.f32 %v87, %v87
    %v89 = vmul.f32 %v37, 0.25
    %v90 = vmul.f32 %v84, 0.75
    %v91 = vadd.f32 %v89, %v90
    %v92 = vmul.f32 %v91, %v88
    %v93 = vmul.f32 %v92, %v62
    %94 = vadd.xlane.f32.xlu0 %v93
    %v95 = vpop.xlane.xlu0 %94
    %v96 = vrot.slane %v95, 4
    %v97 = vadd.f32 %v95, %v96
    %v98 = vrot.slane %v97, 2
    %v99 = vadd.f32 %v97, %v98
    %v100 = vrot.slane %v99, 1
    %v101 = vadd.f32 %v99, %v100
    %s102 = vtos %v101
    %v103 = vsub.f32 %v39, %v43
    %v104 = vand.u32 2147483647, %v103
    %vm105 = vcmp.lt.f32.partialorder %v104, 10.0
    %v106 = vrcp.pop 2.0
    %v107 = vmul.f32 2.0, %v106
    %v108 = vsub.f32 1.0, %v107
    %v109 = vmul.f32 %v106, %v108
    %v110 = vadd.f32 %v106, %v109
    %vm111 = vweird.f32 %v106
    %v112 = vsel %vm111, %v106, %v110
    %v113 = vmul.f32 %v104, %v112
    %v114 = vadd.f32 %v113, 1.0
    %v115 = vlog2.pop %v114
    %v116 = vmul.f32 %v115, 0.6931472
    %v117 = vmul.f32 -0.5, %v113
    %v118 = vadd.f32 %v117, 1.0
    %v119 = vmul.f32 %v118, %v113
    %v120 = vand.u32 2147483647, %v113
    %vm121 = vcmp.lt.f32.partialorder %v120, 0.0004427343
    %v122 = vsel %vm121, %v119, %v116
    %v123 = vmul.f32 %v122, 10.0
    %v124 = vsub.f32 %v104, -7.917595
    %v125 = vsel %vm105, %v123, %v124
    %v126 = vsub.f32 %v41, %v45
    %v127 = vand.u32 2147483647, %v126
    %vm128 = vcmp.lt.f32.partialorder %v127, 10.0
    %v129 = vmul.f32 %v127, %v112
    %v130 = vadd.f32 %v129, 1.0
    %v131 = vlog2.pop %v130
    %v132 = vmul.f32 %v131, 0.6931472
    %v133 = vmul.f32 -0.5, %v129
    %v134 = vadd.f32 %v133, 1.0
    %v135 = vmul.f32 %v134, %v129
    %v136 = vand.u32 2147483647, %v129
    %vm137 = vcmp.lt.f32.partialorder %v136, 0.0004427343
    %v138 = vsel %vm137, %v135, %v132
    %v139 = vmul.f32 %v138, 10.0
    %v140 = vsub.f32 %v127, -7.917595
    %v141 = vsel %vm128, %v139, %v140
    %v142 = vadd.f32 %v125, %v141
    %v143 = vmul.f32 %v142, %v37
    %144 = vadd.xlane.f32.xlu0 %v143
    %v145 = vpop.xlane.xlu0 %144
    %v146 = vrot.slane %v145, 4
    %v147 = vadd.f32 %v145, %v146
    %v148 = vrot.slane %v147, 2
    %v149 = vadd.f32 %v147, %v148
    %v150 = vrot.slane %v149, 1
    %v151 = vadd.f32 %v149, %v150
    %s152 = vtos %v151
    %153 = vadd.xlane.f32.xlu0 %v37
    %v154 = vpop.xlane.xlu0 %153
    %v155 = vrot.slane %v154, 4
    %v156 = vadd.f32 %v154, %v155
    %v157 = vrot.slane %v156, 2
    %v158 = vadd.f32 %v156, %v157
    %v159 = vrot.slane %v158, 1
    %v160 = vadd.f32 %v158, %v159
    %s161 = vtos %v160
    %s162 = sld [smem:[#allocation5]]
    %s163 = sadd.f32 %s162, %s102
    %s164 = scalar_lea.smem [#allocation5], 0
    %165 = sst [smem:[%s164]] %s163
    %s166 = sld [smem:[#allocation5 + $0x1]]
    %s167 = sadd.f32 %s166, %s152
    %s168 = scalar_lea.smem [#allocation5], 1
    %169 = sst [smem:[%s168]] %s167
    %s170 = sld [smem:[#allocation5 + $0x2]]
    %s171 = smul.f32 %s161, 2.0
    %s172 = sadd.f32 %s170, %s171
    %s173 = scalar_lea.smem [#allocation5], 2
    %174 = sst [smem:[%s173]] %s172
    // Predicated region
    $region14: #{tpu_custom_call.1} parent=1 // pred_check
      _
    $region15: #{tpu_custom_call.1} parent=1 // pred_check_branch
      %176 = sbr.rel (0) target = $region17
    $region16: #{tpu_custom_call.1} parent=1 // pred_region
      %178 = vsyncadd [#allocation4], 0
      %s180 = sshll.u32 %s1, 4
      %s181 = int_to_ptr.hbm [resolvable:$true] %s180
      %183 = dma.smem_to_hbm [#allocation5], 16, %s181, [#allocation4]
    $region17: #{tpu_custom_call.1} parent=1 // pred_fallthru
      _
    // Predicated region
    $region18: #{tpu_custom_call.1} parent=1 // pred_check
      _
    $region19: #{tpu_custom_call.1} parent=1 // pred_check_branch
      %185 = sbr.rel (0) target = $region21
    $region20: #{tpu_custom_call.1} parent=1 // pred_region
      %187 = dma.done [#allocation4], 16
    $region21: #{tpu_custom_call.1} parent=1 // pred_fallthru
      _
    %188 = sfence
    %189 = vsyncpa [#allocation3], 1
    %190 = vsyncpa [#allocation4], 1

</llo_original>
